<compile_context>
chip_gen: v5e
topology: v5e:2x2
jax: 0.10.0
libtpu: 0.0.40
codegen_flags: <defaults>
</compile_context>

<pallas_src>
import functools

import jax
import jax.numpy as jnp
from jax import lax
from jax.experimental import pallas as pl
from jax.experimental.pallas import tpu as pltpu


# ----------------------------- Pallas kernel --------------------------------
def _conv2d_normal_kernel(x_ref, w_ref, b_ref, out_ref, *,
                          n_tasks, k, img_w, out_span):
    # x_ref  : (C, H*W)            one image, flattened spatial (compute dtype)
    # w_ref  : (k*k, out_ch, C)    conv weight, taps-major (compute dtype)
    # b_ref  : (out_ch, 1)         bias, f32
    # out_ref: (out_ch, out_span)  rows [:n_tasks] = mu, rows [n_tasks:] = sigma
    acc = None
    for kh in range(k):
        for kw in range(k):
            off = kh * img_w + kw
            xs = x_ref[:, off:off + out_span]          # static lane-window slice
            wk = w_ref[kh * k + kw]                    # (out_ch, C)
            p = jnp.dot(wk, xs, preferred_element_type=jnp.float32)
            acc = p if acc is None else acc + p

    acc = acc + b_ref[...]                             # (out_ch,1) broadcast, VPU
    sig = jax.nn.softplus(acc) + 1e-6                  # EUP slot (all rows; idle otherwise)
    row = lax.broadcasted_iota(jnp.int32, acc.shape, 0)
    out_ref[...] = jnp.where(row < n_tasks, acc, sig).astype(out_ref.dtype)


# ------------------------------- wrapper -------------------------------------
def _conv2d_normal_forward_impl(x, weight, bias, *, n_tasks,
                                compute_dtype=jnp.float32):
    """Conv2DNormal.forward (stride=1, no padding).  Handles 3-D CHW and 4-D NCHW."""
    squeeze_batch = (x.ndim == 3)
    if squeeze_batch:
        x = x[None]
    N, C, H, W = x.shape
    out_ch, c_in, k, k2 = weight.shape
    assert out_ch == 2 * n_tasks and c_in == C and k == k2
    assert H >= k and W >= k, "input smaller than kernel"
    Ho, Wo = H - k + 1, W - k + 1

    # Flat-shift trick: a slab of width out_span = Ho*W - (k-1) covers every
    # valid output pixel (max flat index (Ho-1)*W + Wo-1 = Ho*W - k), and with
    # this width every lane window x[:, off:off+out_span] (off <= (k-1)*(W+1))
    # stays inside the un-padded H*W image.  Wrap-around columns (w >= Wo) are
    # garbage and get sliced off outside.
    out_span = Ho * W - (k - 1)

    x_flat = x.reshape(N, C, H * W).astype(compute_dtype)           # free reshape
    w_taps = weight.transpose(2, 3, 0, 1).reshape(k * k, out_ch, C).astype(compute_dtype)
    b_col = bias.reshape(out_ch, 1).astype(jnp.float32)

    kernel = functools.partial(_conv2d_normal_kernel, n_tasks=n_tasks, k=k,
                               img_w=W, out_span=out_span)

    itemsize = jnp.dtype(compute_dtype).itemsize
    # Per-step VMEM: double-buffered image in + f32 slab out (+ tiny weight/bias).
    vmem_need = (2 * (C * H * W * itemsize + out_ch * out_span * 4)
                 + w_taps.size * itemsize + 256)
    compiler_kwargs = dict(dimension_semantics=("parallel",))
    if vmem_need > (16 << 20):   # exceeds the most conservative scoped default (v5e)
        # TODO(synk): tile the spatial axis (with a k-1 row halo) instead of only
        # raising the limit once a single image no longer fits scoped VMEM.
        compiler_kwargs["vmem_limit_bytes"] = int(min(vmem_need * 3 // 2, 60 << 20))

    slab = pl.pallas_call(
        kernel,
        out_shape=jax.ShapeDtypeStruct((N, out_ch, out_span), jnp.float32),
        grid=(N,),
        in_specs=[
            pl.BlockSpec((None, C, H * W), lambda n: (n, 0, 0)),    # one image
            pl.BlockSpec((k * k, out_ch, C), lambda n: (0, 0, 0)),  # full weight
            pl.BlockSpec((out_ch, 1), lambda n: (0, 0)),            # bias
        ],
        out_specs=pl.BlockSpec((None, out_ch, out_span), lambda n: (n, 0, 0)),
        compiler_params=pltpu.CompilerParams(**compiler_kwargs),
        cost_estimate=pl.CostEstimate(
            flops=2 * N * out_ch * C * k * k * out_span,
            transcendentals=2 * N * out_ch * out_span,   # softplus ~ exp + log per elem
            bytes_accessed=(N * C * H * W + k * k * out_ch * C) * itemsize
                           + 4 * (out_ch + N * out_ch * out_span),
        ),
    )(x_flat, w_taps, b_col)

    # Glue (fused under jit): restore the k-1 dropped trailing columns, fold the
    # flat axis back to (Ho, W) rows and keep the Wo valid columns of each row.
    slab = jnp.pad(slab, ((0, 0), (0, 0), (0, Ho * W - out_span)))
    conv = slab.reshape(N, out_ch, Ho, W)[:, :, :, :Wo]
    mu, sigma = conv[:, :n_tasks], conv[:, n_tasks:]
    out = jnp.stack([mu, sigma])                         # [2, N, n_tasks, Ho, Wo]
    if squeeze_batch:
        out = out[:, 0]                                  # [2, n_tasks, Ho, Wo]
    return out


conv2d_normal_forward = jax.jit(
    _conv2d_normal_forward_impl, static_argnames=("n_tasks", "compute_dtype"))


# ------------------------------ reference ------------------------------------
def _reference(x, weight, bias, n_tasks):
    conv = lax.conv_general_dilated(
        x, weight, window_strides=(1, 1), padding="VALID",
        dimension_numbers=("NCHW", "OIHW", "NCHW"))
    conv = conv + bias.reshape(1, -1, 1, 1)
    mu = conv[:, :n_tasks]
    sigma = jax.nn.softplus(conv[:, n_tasks:]) + 1e-6
    return jnp.stack([mu, sigma])


# --------------------------------- main ---------------------------------------
if __name__ == "__main__":
    # Module config: in_channels=4, out_tasks=2, kernel_size=3 (stride 1, no pad)
    in_channels, out_tasks, kernel_size = 4, 2, 3
    out_channels = 2 * out_tasks

    key = jax.random.PRNGKey(0)
    kx, kwt, kb = jax.random.split(key, 3)

    # Deterministic parameter init (uniform, Conv2d-style fan-in scaling).
    fan_in = in_channels * kernel_size * kernel_size
    bound = 1.0 / (fan_in ** 0.5)
    weight = jax.random.uniform(
        kwt, (out_channels, in_channels, kernel_size, kernel_size),
        minval=-bound, maxval=bound, dtype=jnp.float32)
    bias = jax.random.uniform(
        kb, (out_channels,), minval=-bound, maxval=bound, dtype=jnp.float32)

    x = jax.random.normal(kx, (2, in_channels, 16, 16), dtype=jnp.float32)
    ref = _reference(x, weight, bias, out_tasks)

    # 4-D (NCHW) branch, f32 streaming.
    out = conv2d_normal_forward(x, weight, bias, n_tasks=out_tasks)
    out = jax.block_until_ready(out)
    assert out.shape == (2, 2, out_tasks, 14, 14), out.shape
    assert jnp.allclose(out, ref, atol=1e-4, rtol=1e-4)

    # 4-D branch, bf16-streamed inputs (f32 accumulate + f32 epilogue).
    out_bf16 = conv2d_normal_forward(x, weight, bias, n_tasks=out_tasks,
                                     compute_dtype=jnp.bfloat16)
    out_bf16 = jax.block_until_ready(out_bf16)
    assert jnp.allclose(out_bf16, ref, atol=5e-2, rtol=5e-2)

    # 3-D (unbatched CHW) branch of the PyTorch module.
    out3 = conv2d_normal_forward(x[0], weight, bias, n_tasks=out_tasks)
    out3 = jax.block_until_ready(out3)
    assert out3.shape == (2, out_tasks, 14, 14), out3.shape
    assert jnp.allclose(out3, ref[:, 0], atol=1e-4, rtol=1e-4)

    print("KERNEL_OK")
</pallas_src>

<mosaic_0001>
module attributes {stable_mosaic.version = 11 : i64} {
  func.func @_conv2d_normal_kernel(%arg0: i32, %arg1: memref<1x4x256xf32, #tpu.memory_space<vmem>>, %arg2: memref<9x4x4xf32, #tpu.memory_space<vmem>>, %arg3: memref<4x1xf32, #tpu.memory_space<vmem>>, %arg4: memref<1x4x222xf32, #tpu.memory_space<vmem>>) attributes {dimension_semantics = [#tpu.dimension_semantics<parallel>], iteration_bounds = array<i64: 2>, scalar_prefetch = 0 : i64, scratch_operands = 0 : i64, tpu.core_type = #tpu.core_type<tc>, window_params = [{transform_indices = @transform_0, window_bounds = array<i64: 1, 4, 256>}, {pipeline_mode = #tpu.pipeline_mode<synchronous>, transform_indices = @transform_1, window_bounds = array<i64: 9, 4, 4>}, {pipeline_mode = #tpu.pipeline_mode<synchronous>, transform_indices = @transform_2, window_bounds = array<i64: 4, 1>}, {transform_indices = @transform_3, window_bounds = array<i64: 1, 4, 222>}]} {
    %c0 = arith.constant 0 : index
    %c0_0 = arith.constant 0 : index
    %c0_1 = arith.constant 0 : index
    %0 = vector.load %arg1[%c0, %c0_0, %c0_1] : memref<1x4x256xf32, #tpu.memory_space<vmem>>, vector<1x4x222xf32>
    %1 = vector.shape_cast %0 : vector<1x4x222xf32> to vector<4x222xf32>
    %c0_2 = arith.constant 0 : index
    %c0_3 = arith.constant 0 : index
    %c0_4 = arith.constant 0 : index
    %2 = vector.load %arg2[%c0_2, %c0_3, %c0_4] : memref<9x4x4xf32, #tpu.memory_space<vmem>>, vector<1x4x4xf32>
    %3 = vector.shape_cast %2 : vector<1x4x4xf32> to vector<4x4xf32>
    %cst = arith.constant dense<0.000000e+00> : vector<4x222xf32>
    %4 = tpu.matmul %3, %1, %cst {dimension_numbers = #tpu.dot_dimension_numbers<[1], [0], [0], [1], [0, 0, 1, 1], [], []>} : vector<4x4xf32>, vector<4x222xf32>, vector<4x222xf32> -> vector<4x222xf32>
    %c0_5 = arith.constant 0 : index
    %c0_6 = arith.constant 0 : index
    %c1 = arith.constant 1 : index
    %5 = vector.load %arg1[%c0_5, %c0_6, %c1] : memref<1x4x256xf32, #tpu.memory_space<vmem>>, vector<1x4x222xf32>
    %6 = vector.shape_cast %5 : vector<1x4x222xf32> to vector<4x222xf32>
    %c1_7 = arith.constant 1 : index
    %c0_8 = arith.constant 0 : index
    %c0_9 = arith.constant 0 : index
    %7 = vector.load %arg2[%c1_7, %c0_8, %c0_9] : memref<9x4x4xf32, #tpu.memory_space<vmem>>, vector<1x4x4xf32>
    %8 = vector.shape_cast %7 : vector<1x4x4xf32> to vector<4x4xf32>
    %cst_10 = arith.constant dense<0.000000e+00> : vector<4x222xf32>
    %9 = tpu.matmul %8, %6, %cst_10 {dimension_numbers = #tpu.dot_dimension_numbers<[1], [0], [0], [1], [0, 0, 1, 1], [], []>} : vector<4x4xf32>, vector<4x222xf32>, vector<4x222xf32> -> vector<4x222xf32>
    %10 = arith.addf %4, %9 : vector<4x222xf32>
    %c0_11 = arith.constant 0 : index
    %c0_12 = arith.constant 0 : index
    %c2 = arith.constant 2 : index
    %11 = vector.load %arg1[%c0_11, %c0_12, %c2] : memref<1x4x256xf32, #tpu.memory_space<vmem>>, vector<1x4x222xf32>
    %12 = vector.shape_cast %11 : vector<1x4x222xf32> to vector<4x222xf32>
    %c2_13 = arith.constant 2 : index
    %c0_14 = arith.constant 0 : index
    %c0_15 = arith.constant 0 : index
    %13 = vector.load %arg2[%c2_13, %c0_14, %c0_15] : memref<9x4x4xf32, #tpu.memory_space<vmem>>, vector<1x4x4xf32>
    %14 = vector.shape_cast %13 : vector<1x4x4xf32> to vector<4x4xf32>
    %cst_16 = arith.constant dense<0.000000e+00> : vector<4x222xf32>
    %15 = tpu.matmul %14, %12, %cst_16 {dimension_numbers = #tpu.dot_dimension_numbers<[1], [0], [0], [1], [0, 0, 1, 1], [], []>} : vector<4x4xf32>, vector<4x222xf32>, vector<4x222xf32> -> vector<4x222xf32>
    %16 = arith.addf %10, %15 : vector<4x222xf32>
    %c0_17 = arith.constant 0 : index
    %c0_18 = arith.constant 0 : index
    %c16 = arith.constant 16 : index
    %17 = vector.load %arg1[%c0_17, %c0_18, %c16] : memref<1x4x256xf32, #tpu.memory_space<vmem>>, vector<1x4x222xf32>
    %18 = vector.shape_cast %17 : vector<1x4x222xf32> to vector<4x222xf32>
    %c3 = arith.constant 3 : index
    %c0_19 = arith.constant 0 : index
    %c0_20 = arith.constant 0 : index
    %19 = vector.load %arg2[%c3, %c0_19, %c0_20] : memref<9x4x4xf32, #tpu.memory_space<vmem>>, vector<1x4x4xf32>
    %20 = vector.shape_cast %19 : vector<1x4x4xf32> to vector<4x4xf32>
    %cst_21 = arith.constant dense<0.000000e+00> : vector<4x222xf32>
    %21 = tpu.matmul %20, %18, %cst_21 {dimension_numbers = #tpu.dot_dimension_numbers<[1], [0], [0], [1], [0, 0, 1, 1], [], []>} : vector<4x4xf32>, vector<4x222xf32>, vector<4x222xf32> -> vector<4x222xf32>
    %22 = arith.addf %16, %21 : vector<4x222xf32>
    %c0_22 = arith.constant 0 : index
    %c0_23 = arith.constant 0 : index
    %c17 = arith.constant 17 : index
    %23 = vector.load %arg1[%c0_22, %c0_23, %c17] : memref<1x4x256xf32, #tpu.memory_space<vmem>>, vector<1x4x222xf32>
    %24 = vector.shape_cast %23 : vector<1x4x222xf32> to vector<4x222xf32>
    %c4 = arith.constant 4 : index
    %c0_24 = arith.constant 0 : index
    %c0_25 = arith.constant 0 : index
    %25 = vector.load %arg2[%c4, %c0_24, %c0_25] : memref<9x4x4xf32, #tpu.memory_space<vmem>>, vector<1x4x4xf32>
    %26 = vector.shape_cast %25 : vector<1x4x4xf32> to vector<4x4xf32>
    %cst_26 = arith.constant dense<0.000000e+00> : vector<4x222xf32>
    %27 = tpu.matmul %26, %24, %cst_26 {dimension_numbers = #tpu.dot_dimension_numbers<[1], [0], [0], [1], [0, 0, 1, 1], [], []>} : vector<4x4xf32>, vector<4x222xf32>, vector<4x222xf32> -> vector<4x222xf32>
    %28 = arith.addf %22, %27 : vector<4x222xf32>
    %c0_27 = arith.constant 0 : index
    %c0_28 = arith.constant 0 : index
    %c18 = arith.constant 18 : index
    %29 = vector.load %arg1[%c0_27, %c0_28, %c18] : memref<1x4x256xf32, #tpu.memory_space<vmem>>, vector<1x4x222xf32>
    %30 = vector.shape_cast %29 : vector<1x4x222xf32> to vector<4x222xf32>
    %c5 = arith.constant 5 : index
    %c0_29 = arith.constant 0 : index
    %c0_30 = arith.constant 0 : index
    %31 = vector.load %arg2[%c5, %c0_29, %c0_30] : memref<9x4x4xf32, #tpu.memory_space<vmem>>, vector<1x4x4xf32>
    %32 = vector.shape_cast %31 : vector<1x4x4xf32> to vector<4x4xf32>
    %cst_31 = arith.constant dense<0.000000e+00> : vector<4x222xf32>
    %33 = tpu.matmul %32, %30, %cst_31 {dimension_numbers = #tpu.dot_dimension_numbers<[1], [0], [0], [1], [0, 0, 1, 1], [], []>} : vector<4x4xf32>, vector<4x222xf32>, vector<4x222xf32> -> vector<4x222xf32>
    %34 = arith.addf %28, %33 : vector<4x222xf32>
    %c0_32 = arith.constant 0 : index
    %c0_33 = arith.constant 0 : index
    %c32 = arith.constant 32 : index
    %35 = vector.load %arg1[%c0_32, %c0_33, %c32] : memref<1x4x256xf32, #tpu.memory_space<vmem>>, vector<1x4x222xf32>
    %36 = vector.shape_cast %35 : vector<1x4x222xf32> to vector<4x222xf32>
    %c6 = arith.constant 6 : index
    %c0_34 = arith.constant 0 : index
    %c0_35 = arith.constant 0 : index
    %37 = vector.load %arg2[%c6, %c0_34, %c0_35] : memref<9x4x4xf32, #tpu.memory_space<vmem>>, vector<1x4x4xf32>
    %38 = vector.shape_cast %37 : vector<1x4x4xf32> to vector<4x4xf32>
    %cst_36 = arith.constant dense<0.000000e+00> : vector<4x222xf32>
    %39 = tpu.matmul %38, %36, %cst_36 {dimension_numbers = #tpu.dot_dimension_numbers<[1], [0], [0], [1], [0, 0, 1, 1], [], []>} : vector<4x4xf32>, vector<4x222xf32>, vector<4x222xf32> -> vector<4x222xf32>
    %40 = arith.addf %34, %39 : vector<4x222xf32>
    %c0_37 = arith.constant 0 : index
    %c0_38 = arith.constant 0 : index
    %c33 = arith.constant 33 : index
    %41 = vector.load %arg1[%c0_37, %c0_38, %c33] : memref<1x4x256xf32, #tpu.memory_space<vmem>>, vector<1x4x222xf32>
    %42 = vector.shape_cast %41 : vector<1x4x222xf32> to vector<4x222xf32>
    %c7 = arith.constant 7 : index
    %c0_39 = arith.constant 0 : index
    %c0_40 = arith.constant 0 : index
    %43 = vector.load %arg2[%c7, %c0_39, %c0_40] : memref<9x4x4xf32, #tpu.memory_space<vmem>>, vector<1x4x4xf32>
    %44 = vector.shape_cast %43 : vector<1x4x4xf32> to vector<4x4xf32>
    %cst_41 = arith.constant dense<0.000000e+00> : vector<4x222xf32>
    %45 = tpu.matmul %44, %42, %cst_41 {dimension_numbers = #tpu.dot_dimension_numbers<[1], [0], [0], [1], [0, 0, 1, 1], [], []>} : vector<4x4xf32>, vector<4x222xf32>, vector<4x222xf32> -> vector<4x222xf32>
    %46 = arith.addf %40, %45 : vector<4x222xf32>
    %c0_42 = arith.constant 0 : index
    %c0_43 = arith.constant 0 : index
    %c34 = arith.constant 34 : index
    %47 = vector.load %arg1[%c0_42, %c0_43, %c34] : memref<1x4x256xf32, #tpu.memory_space<vmem>>, vector<1x4x222xf32>
    %48 = vector.shape_cast %47 : vector<1x4x222xf32> to vector<4x222xf32>
    %c8 = arith.constant 8 : index
    %c0_44 = arith.constant 0 : index
    %c0_45 = arith.constant 0 : index
    %49 = vector.load %arg2[%c8, %c0_44, %c0_45] : memref<9x4x4xf32, #tpu.memory_space<vmem>>, vector<1x4x4xf32>
    %50 = vector.shape_cast %49 : vector<1x4x4xf32> to vector<4x4xf32>
    %cst_46 = arith.constant dense<0.000000e+00> : vector<4x222xf32>
    %51 = tpu.matmul %50, %48, %cst_46 {dimension_numbers = #tpu.dot_dimension_numbers<[1], [0], [0], [1], [0, 0, 1, 1], [], []>} : vector<4x4xf32>, vector<4x222xf32>, vector<4x222xf32> -> vector<4x222xf32>
    %52 = arith.addf %46, %51 : vector<4x222xf32>
    %c0_47 = arith.constant 0 : index
    %c0_48 = arith.constant 0 : index
    %53 = vector.load %arg3[%c0_47, %c0_48] : memref<4x1xf32, #tpu.memory_space<vmem>>, vector<4x1xf32>
    %54 = vector.broadcast %53 : vector<4x1xf32> to vector<4x222xf32>
    %55 = arith.addf %52, %54 : vector<4x222xf32>
    %cst_49 = arith.constant 0.000000e+00 : f32
    %56 = vector.broadcast %cst_49 : f32 to vector<4x222xf32>
    %57 = arith.maximumf %55, %56 : vector<4x222xf32>
    %58 = vector.broadcast %cst_49 : f32 to vector<4x222xf32>
    %59 = arith.subf %55, %58 : vector<4x222xf32>
    %60 = arith.cmpf one, %59, %59 : vector<4x222xf32>
    %61 = vector.broadcast %cst_49 : f32 to vector<4x222xf32>
    %62 = arith.addf %55, %61 : vector<4x222xf32>
    %63 = math.absf %59 : vector<4x222xf32>
    %cst_50 = arith.constant 0.000000e+00 : f32
    %64 = vector.broadcast %cst_50 : f32 to vector<4x222xf32>
    %65 = arith.subf %64, %63 : vector<4x222xf32>
    %66 = math.exp %65 : vector<4x222xf32>
    %67 = math.log1p %66 : vector<4x222xf32>
    %68 = arith.addf %57, %67 : vector<4x222xf32>
    %69 = arith.select %60, %62, %68 : vector<4x222xi1>, vector<4x222xf32>
    %cst_51 = arith.constant 9.99999997E-7 : f32
    %70 = vector.broadcast %cst_51 : f32 to vector<4x222xf32>
    %71 = arith.addf %69, %70 : vector<4x222xf32>
    %72 = tpu.iota {dimensions = array<i32: 0>} : vector<4x222xi32>
    %c2_i32 = arith.constant 2 : i32
    %73 = vector.broadcast %c2_i32 : i32 to vector<4x222xi32>
    %74 = arith.cmpi slt, %72, %73 : vector<4x222xi32>
    %75 = arith.select %74, %55, %71 : vector<4x222xi1>, vector<4x222xf32>
    %c0_52 = arith.constant 0 : index
    %c0_53 = arith.constant 0 : index
    %c0_54 = arith.constant 0 : index
    %76 = vector.load %arg4[%c0_52, %c0_53, %c0_54] : memref<1x4x222xf32, #tpu.memory_space<vmem>>, vector<1x4x222xf32>
    %77 = vector.shape_cast %76 : vector<1x4x222xf32> to vector<4x222xf32>
    %78 = vector.shape_cast %75 : vector<4x222xf32> to vector<1x4x222xf32>
    tpu.vector_store %arg4[%c0_52, %c0_53, %c0_54], %78 {strides = array<i32>} : memref<1x4x222xf32, #tpu.memory_space<vmem>>, vector<1x4x222xf32>,
    return
  }
  func.func @transform_0(%arg0: i32) -> (i32, i32, i32) {
    %c0_i32 = arith.constant 0 : i32
    %c0_i32_0 = arith.constant 0 : i32
    %c0_i32_1 = arith.constant 0 : i32
    return %arg0, %c0_i32, %c0_i32_0 : i32, i32, i32
  }
  func.func @transform_1(%arg0: i32) -> (i32, i32, i32) {
    %c0_i32 = arith.constant 0 : i32
    %c0_i32_0 = arith.constant 0 : i32
    %c0_i32_1 = arith.constant 0 : i32
    %c0_i32_2 = arith.constant 0 : i32
    return %c0_i32, %c0_i32_0, %c0_i32_1 : i32, i32, i32
  }
  func.func @transform_2(%arg0: i32) -> (i32, i32) {
    %c0_i32 = arith.constant 0 : i32
    %c0_i32_0 = arith.constant 0 : i32
    %c0_i32_1 = arith.constant 0 : i32
    return %c0_i32, %c0_i32_0 : i32, i32
  }
  func.func @transform_3(%arg0: i32) -> (i32, i32, i32) {
    %c0_i32 = arith.constant 0 : i32
    %c0_i32_0 = arith.constant 0 : i32
    %c0_i32_1 = arith.constant 0 : i32
    return %arg0, %c0_i32, %c0_i32_0 : i32, i32, i32
  }
}

</mosaic_0001>

<llo_original>
// kernel: _conv2d_normal_forward_impl.1
$region0: #{_conv2d_normal_forward_impl.1}
  #allocation0 [shape = 'u32[]', space=smem, size = 0x4, offset = 0x4, fixed_abs, tag = 'smem constant byte address 0x4 - core index']
  #allocation1 [shape = 'u32[72,128]{1,0:T(1,128)}', space=vmem, size = 0x9000, scoped, tag = 'internal scratch']
  %s0 = inlined_call_operand.vmem [shape: f32[2,4,256], index: 0, kind: input, shape index: {}]
  %s1 = inlined_call_operand.vmem [shape: f32[9,4,4], index: 1, kind: input, shape index: {}]
  %s2 = inlined_call_operand.vmem [shape: f32[4,1], index: 2, kind: input, shape index: {}]
  %s3 = inlined_call_operand.vmem [shape: f32[2,4,222], index: 3, kind: output, shape index: {}]
  %s4 = sld [smem:[#allocation0]]
  $region45: #{_conv2d_normal_forward_impl.1} parent=0
    _
  %s6 = ssub.s32 1, %s4
  %s7 = scalar_select 0, %s6, %s4
  loop: start=0, step=1, limit=4
  $region2: #{_conv2d_normal_forward_impl.1} parent=0 // loop_pre_header
    _
  $region3: #{_conv2d_normal_forward_impl.1} parent=0 // loop_header
    %s9 = sphi 0, %s13
    %p10 = scmp.ge.s32.totalorder %s9, 4
    %s19 = sphi 0, %s21
    %s22 = sphi 0, %s19
    %s23 = sphi 0, %s22
    %s39 = sphi 0, %s23
    %s43 = sphi 0, %s43
    %s45 = sphi 0, %s43
    %s46 = sphi 0, %s45
    %s60 = sphi 0, %s46
    %s64 = sphi 0, %s64
    %s66 = sphi 0, %s64
    %s67 = sphi 0, %s66
    %s81 = sphi 0, %s67
    %s87 = sphi 0, %s89
    %s90 = sphi 0, %s87
    %s91 = sphi 0, %s90
    %s107 = sphi 0, %s91
  $region4: #{_conv2d_normal_forward_impl.1} parent=0 // loop_header_branch
    %12 = sbr.rel (%p10) target = $region8
  $region5: #{_conv2d_normal_forward_impl.1} parent=0 // loop_body
    %s14 = ssub.s32 %s9, 1
    %s15 = ssub.s32 %s9, 2
    %s16 = sadd.s32 %s9, 1
    %s17 = ssub.s32 %s9, %s16
    %p18 = scmp.eq.s32.totalorder %s17, 0
    %s20 = sadd.s32 %s19, 1
    %s21 = scalar_select %p18, %s19, %s20
    %p24 = pneg %p18
    %p25 = scmp.eq.s32.totalorder %s9, 1
    %p26 = por %p24, %p25
    %p27 = scmp.ne.s32.totalorder %s19, %s22
    %p28 = scmp.eq.s32.totalorder %s9, 0
    %p29 = por %p27, %p28
    %p30 = scmp.ne.s32.totalorder %s19, %s22
    %p31 = scmp.eq.s32.totalorder %s14, 1
    %p32 = por %p30, %p31
    %p33 = scmp.ne.s32.totalorder %s22, %s23
    %p34 = scmp.eq.s32.totalorder %s14, 0
    %p35 = por %p33, %p34
    %p36 = scmp.ne.s32.totalorder %s22, %s23
    %p37 = scmp.eq.s32.totalorder %s15, 1
    %p38 = por %p36, %p37
    %p40 = scmp.ne.s32.totalorder %s23, %s39
    %p41 = scmp.eq.s32.totalorder %s15, 0
    %p42 = por %p40, %p41
    %s44 = sadd.s32 %s43, 1
    %p47 = scmp.eq.s32.totalorder %s9, 1
    %p48 = scmp.ne.s32.totalorder %s43, %s45
    %p49 = scmp.eq.s32.totalorder %s9, 0
    %p50 = por %p48, %p49
    %p51 = scmp.ne.s32.totalorder %s43, %s45
    %p52 = scmp.eq.s32.totalorder %s14, 1
    %p53 = por %p51, %p52
    %p54 = scmp.ne.s32.totalorder %s45, %s46
    %p55 = scmp.eq.s32.totalorder %s14, 0
    %p56 = por %p54, %p55
    %p57 = scmp.ne.s32.totalorder %s45, %s46
    %p58 = scmp.eq.s32.totalorder %s15, 1
    %p59 = por %p57, %p58
    %p61 = scmp.ne.s32.totalorder %s46, %s60
    %p62 = scmp.eq.s32.totalorder %s15, 0
    %p63 = por %p61, %p62
    %s65 = sadd.s32 %s64, 1
    %p68 = scmp.eq.s32.totalorder %s9, 1
    %p69 = scmp.ne.s32.totalorder %s64, %s66
    %p70 = scmp.eq.s32.totalorder %s9, 0
    %p71 = por %p69, %p70
    %p72 = scmp.ne.s32.totalorder %s64, %s66
    %p73 = scmp.eq.s32.totalorder %s14, 1
    %p74 = por %p72, %p73
    %p75 = scmp.ne.s32.totalorder %s66, %s67
    %p76 = scmp.eq.s32.totalorder %s14, 0
    %p77 = por %p75, %p76
    %p78 = scmp.ne.s32.totalorder %s66, %s67
    %p79 = scmp.eq.s32.totalorder %s15, 1
    %p80 = por %p78, %p79
    %p82 = scmp.ne.s32.totalorder %s67, %s81
    %p83 = scmp.eq.s32.totalorder %s15, 0
    %p84 = por %p82, %p83
    %s85 = ssub.s32 %s9, %s16
    %p86 = scmp.eq.s32.totalorder %s85, 0
    %s88 = sadd.s32 %s87, 1
    %s89 = scalar_select %p86, %s87, %s88
    %p92 = pneg %p86
    %p93 = scmp.eq.s32.totalorder %s9, 1
    %p94 = por %p92, %p93
    %p95 = scmp.ne.s32.totalorder %s87, %s90
    %p96 = scmp.eq.s32.totalorder %s9, 0
    %p97 = por %p95, %p96
    %p98 = scmp.ne.s32.totalorder %s87, %s90
    %p99 = scmp.eq.s32.totalorder %s14, 1
    %p100 = por %p98, %p99
    %p101 = scmp.ne.s32.totalorder %s90, %s91
    %p102 = scmp.eq.s32.totalorder %s14, 0
    %p103 = por %p101, %p102
    %p104 = scmp.ne.s32.totalorder %s90, %s91
    %p105 = scmp.eq.s32.totalorder %s15, 1
    %p106 = por %p104, %p105
    %p108 = scmp.ne.s32.totalorder %s91, %s107
    %p109 = scmp.eq.s32.totalorder %s15, 0
    %p110 = por %p108, %p109
    %p111 = scmp.le.s32.totalorder 1, %s9
    %p112 = scmp.lt.s32.totalorder %s9, 3
    %p113 = pnand %p111, %p112
    %p114 = pneg %p113
    // Predicated region
    $region9: #{_conv2d_normal_forward_impl.1} parent=5 // pred_check
      _
    $region10: #{_conv2d_normal_forward_impl.1} parent=5 // pred_check_branch
      %116 = sbr.rel (%p113) target = $region12
    $region11: #{_conv2d_normal_forward_impl.1} parent=5 // pred_region
      %s117 = ssub.s32 %s9, 1
      // Predicated region
      $region13: #{_conv2d_normal_forward_impl.1} parent=11 // pred_check
        %p118 = pneg %p56
      $region14: #{_conv2d_normal_forward_impl.1} parent=11 // pred_check_branch
        %120 = sbr.rel (%p118) target = $region16
      $region15: #{_conv2d_normal_forward_impl.1} parent=11 // pred_region
        _
      $region16: #{_conv2d_normal_forward_impl.1} parent=11 // pred_fallthru
        _
      // Predicated region
      $region17: #{_conv2d_normal_forward_impl.1} parent=11 // pred_check
        %p121 = pneg %p77
      $region18: #{_conv2d_normal_forward_impl.1} parent=11 // pred_check_branch
        %123 = sbr.rel (%p121) target = $region20
      $region19: #{_conv2d_normal_forward_impl.1} parent=11 // pred_region
        _
      $region20: #{_conv2d_normal_forward_impl.1} parent=11 // pred_fallthru
        _
    $region12: #{_conv2d_normal_forward_impl.1} parent=5 // pred_fallthru
      _
    %p124 = scmp.lt.s32.totalorder %s9, 2
    // Predicated region
    $region21: #{_conv2d_normal_forward_impl.1} parent=5 // pred_check
      %p125 = pneg %p124
    $region22: #{_conv2d_normal_forward_impl.1} parent=5 // pred_check_branch
      %127 = sbr.rel (%p125) target = $region24
    $region23: #{_conv2d_normal_forward_impl.1} parent=5 // pred_region
      // Predicated region
      $region25: #{_conv2d_normal_forward_impl.1} parent=23 // pred_check
        %p128 = pneg %p29
      $region26: #{_conv2d_normal_forward_impl.1} parent=23 // pred_check_branch
        %130 = sbr.rel (%p128) target = $region28
      $region27: #{_conv2d_normal_forward_impl.1} parent=23 // pred_region
        %p131 = scmp.lt.s32.totalorder %s9, 1
        %s132 = scalar_select %p131, %s9, 1
        %s133 = smul.addr %s132, 2
        %s134 = smul.addr %s133, 4
        %s135 = scalar_lea.vmem %s0, %s134
      $region28: #{_conv2d_normal_forward_impl.1} parent=23 // pred_fallthru
        _
    $region24: #{_conv2d_normal_forward_impl.1} parent=5 // pred_fallthru
      _
    %p136 = scmp.le.s32.totalorder 1, %s9
    %p137 = scmp.lt.s32.totalorder %s9, 3
    %p138 = pnand %p136, %p137
    %p139 = pneg %p138
    // Predicated region
    $region29: #{_conv2d_normal_forward_impl.1} parent=5 // pred_check
      _
    $region30: #{_conv2d_normal_forward_impl.1} parent=5 // pred_check_branch
      %141 = sbr.rel (%p138) target = $region32
    $region31: #{_conv2d_normal_forward_impl.1} parent=5 // pred_region
      %s142 = ssub.s32 %s9, 1
      %p143 = scmp.lt.s32.totalorder %s14, 1
      %s144 = scalar_select %p143, %s14, 1
      %s145 = smul.addr %s144, 2
      %s146 = smul.addr %s145, 4
      %s147 = scalar_lea.vmem %s0, %s146
      %p148 = pneg %p35
      %p149 = pneg %p32
      %p150 = pneg %p56
      %p151 = pneg %p53
      %p152 = pneg %p77
      %p153 = pneg %p74
      %p154 = pneg %p103
      %p155 = pneg %p100
      %p156 = scmp.lt.s32.totalorder %s14, 1
      %s157 = scalar_select %p156, %s14, 1
      %s158 = smul.addr %s157, 2
      %s159 = smul.addr %s158, 4
      %s160 = scalar_lea.vmem %s3, %s159
      %p161 = scmp.lt.s32.totalorder %s14, 1
      %s162 = scalar_select %p161, %s14, 1
      %s163 = smul.addr %s162, 2
      %s164 = smul.addr %s163, 4
      %s165 = scalar_lea.vmem %s0, %s164
      %p166 = scmp.lt.s32.totalorder %s14, 1
      %s167 = scalar_select %p166, %s14, 1
      %s168 = smul.addr %s167, 2
      %s169 = smul.addr %s168, 4
      %s170 = scalar_lea.vmem %s3, %s169
      %v171 = vld [vmem:[%s165] sm:$0xff]
      %v172 = vld [vmem:[%s1] sm:$0xf]
      %s173 = scalar_lea.vmem %s1, 4
      %v174 = vld [vmem:[%s173] sm:$0xf]
      %176 = vst [vmem:[#allocation1] ss:$2 sm:$0xff] %v171
      %v177 = vld.sshfl [vmem:[#allocation1] sm:$0xff pattern:$0x75316420]
      %v178 = vld.sshfl [vmem:[#allocation1 + $0x8] sm:$0xff pattern:$0x75316420]
      %179 = vrot.lane.b32.xlu0 %v177, 127
      %v180 = vpop.permute.xlu0 %179
      %181 = vrot.lane.b32.xlu0 %v178, 127
      %v182 = vpop.permute.xlu0 %181
      %vm183 = vcmask 1039360
      %v184 = vsel %vm183, %v180, %v182
      %vm185 = vcmask 31744
      %v187 = vsel %vm185, %v174, 0
      %vm189 = vcmask 1043456
      %v190 = vsel %vm189, %v184, 0
      %v192 = vsel %vm189, %v182, 0
      %194 = vmatpush.msra.mxu0 0.0
      %195 = vmatpush.msra.mxu0 0.0
      %196 = vmatpush.msra.mxu0 0.0
      %197 = vmatpush.msra.mxu0 0.0
      %198 = vmatpush.msra.mxu0 0.0
      %199 = vmatpush.msra.mxu0 0.0
      %200 = vmatpush.msra.mxu0 0.0
      %201 = vmatpush.msra.mxu0 0.0
      %202 = vmatpush.msra.mxu0 0.0
      %203 = vmatpush.msra.mxu0 0.0
      %204 = vmatpush.msra.mxu0 0.0
      %205 = vmatpush.msra.mxu0 0.0
      %206 = vmatpush.msra.mxu0 0.0
      %207 = vmatpush.msra.mxu0 0.0
      %208 = vmatpush.msra.mxu0 0.0
      %209 = vmatpush.msra.mxu0 %v190
      %210 = vmatmul.f32.gmra.mxu0 %v187
      %v211 = vpop.f32.mrf.mxu0
      %v212 = vadd.f32 0.0, %v211
      %213 = vdwg.mxu0
      %214 = vmatpush.msra.mxu0 0.0
      %215 = vmatpush.msra.mxu0 0.0
      %216 = vmatpush.msra.mxu0 0.0
      %217 = vmatpush.msra.mxu0 0.0
      %218 = vmatpush.msra.mxu0 0.0
      %219 = vmatpush.msra.mxu0 0.0
      %220 = vmatpush.msra.mxu0 0.0
      %221 = vmatpush.msra.mxu0 0.0
      %222 = vmatpush.msra.mxu0 0.0
      %223 = vmatpush.msra.mxu0 0.0
      %224 = vmatpush.msra.mxu0 0.0
      %225 = vmatpush.msra.mxu0 0.0
      %226 = vmatpush.msra.mxu0 0.0
      %227 = vmatpush.msra.mxu0 0.0
      %228 = vmatpush.msra.mxu0 0.0
      %229 = vmatpush.msra.mxu0 %v192
      %230 = vmatmul.f32.gmra.mxu0 %v187
      %v231 = vpop.f32.mrf.mxu0
      %v232 = vadd.f32 0.0, %v231
      %233 = vdwg.mxu0
      %234 = vst [vmem:[#allocation1] ss:$2 sm:$0xff] %v171
      %v235 = vld.sshfl [vmem:[#allocation1] sm:$0xff pattern:$0x75316420]
      %v236 = vld.sshfl [vmem:[#allocation1 + $0x8] sm:$0xff pattern:$0x75316420]
      %v238 = vsel %vm185, %v172, 0
      %v240 = vsel %vm189, %v235, 0
      %v242 = vsel %vm189, %v236, 0
      %244 = vmatpush.msra.mxu0 0.0
      %245 = vmatpush.msra.mxu0 0.0
      %246 = vmatpush.msra.mxu0 0.0
      %247 = vmatpush.msra.mxu0 0.0
      %248 = vmatpush.msra.mxu0 0.0
      %249 = vmatpush.msra.mxu0 0.0
      %250 = vmatpush.msra.mxu0 0.0
      %251 = vmatpush.msra.mxu0 0.0
      %252 = vmatpush.msra.mxu0 0.0
      %253 = vmatpush.msra.mxu0 0.0
      %254 = vmatpush.msra.mxu0 0.0
      %255 = vmatpush.msra.mxu0 0.0
      %256 = vmatpush.msra.mxu0 0.0
      %257 = vmatpush.msra.mxu0 0.0
      %258 = vmatpush.msra.mxu0 0.0
      %259 = vmatpush.msra.mxu0 %v240
      %260 = vmatmul.f32.gmra.mxu0 %v238
      %v261 = vpop.f32.mrf.mxu0
      %v262 = vadd.f32 %v212, %v261
      %263 = vdwg.mxu0
      %264 = vmatpush.msra.mxu0 0.0
      %265 = vmatpush.msra.mxu0 0.0
      %266 = vmatpush.msra.mxu0 0.0
      %267 = vmatpush.msra.mxu0 0.0
      %268 = vmatpush.msra.mxu0 0.0
      %269 = vmatpush.msra.mxu0 0.0
      %270 = vmatpush.msra.mxu0 0.0
      %271 = vmatpush.msra.mxu0 0.0
      %272 = vmatpush.msra.mxu0 0.0
      %273 = vmatpush.msra.mxu0 0.0
      %274 = vmatpush.msra.mxu0 0.0
      %275 = vmatpush.msra.mxu0 0.0
      %276 = vmatpush.msra.mxu0 0.0
      %277 = vmatpush.msra.mxu0 0.0
      %278 = vmatpush.msra.mxu0 0.0
      %279 = vmatpush.msra.mxu0 %v242
      %280 = vmatmul.f32.gmra.mxu0 %v238
      %v281 = vpop.f32.mrf.mxu0
      %v282 = vadd.f32 %v232, %v281
      %283 = vdwg.mxu0
      %v284 = vld [vmem:[%s165] sm:$0xff]
      %s285 = scalar_lea.vmem %s1, 8
      %v286 = vld [vmem:[%s285] sm:$0xf]
      %288 = vst [vmem:[#allocation1] ss:$2 sm:$0xff] %v284
      %v289 = vld.sshfl [vmem:[#allocation1] sm:$0xff pattern:$0x75316420]
      %v290 = vld.sshfl [vmem:[#allocation1 + $0x8] sm:$0xff pattern:$0x75316420]
      %291 = vrot.lane.b32.xlu0 %v289, 126
      %v292 = vpop.permute.xlu0 %291
      %293 = vrot.lane.b32.xlu0 %v290, 126
      %v294 = vpop.permute.xlu0 %293
      %vm295 = vcmask 1031168
      %v296 = vsel %vm295, %v292, %v294
      %v298 = vsel %vm185, %v286, 0
      %v300 = vsel %vm189, %v296, 0
      %v302 = vsel %vm189, %v294, 0
      %304 = vmatpush.msra.mxu0 0.0
      %305 = vmatpush.msra.mxu0 0.0
      %306 = vmatpush.msra.mxu0 0.0
      %307 = vmatpush.msra.mxu0 0.0
      %308 = vmatpush.msra.mxu0 0.0
      %309 = vmatpush.msra.mxu0 0.0
      %310 = vmatpush.msra.mxu0 0.0
      %311 = vmatpush.msra.mxu0 0.0
      %312 = vmatpush.msra.mxu0 0.0
      %313 = vmatpush.msra.mxu0 0.0
      %314 = vmatpush.msra.mxu0 0.0
      %315 = vmatpush.msra.mxu0 0.0
      %316 = vmatpush.msra.mxu0 0.0
      %317 = vmatpush.msra.mxu0 0.0
      %318 = vmatpush.msra.mxu0 0.0
      %319 = vmatpush.msra.mxu0 %v300
      %320 = vmatmul.f32.gmra.mxu0 %v298
      %v321 = vpop.f32.mrf.mxu0
      %v322 = vadd.f32 0.0, %v321
      %323 = vdwg.mxu0
      %324 = vmatpush.msra.mxu0 0.0
      %325 = vmatpush.msra.mxu0 0.0
      %326 = vmatpush.msra.mxu0 0.0
      %327 = vmatpush.msra.mxu0 0.0
      %328 = vmatpush.msra.mxu0 0.0
      %329 = vmatpush.msra.mxu0 0.0
      %330 = vmatpush.msra.mxu0 0.0
      %331 = vmatpush.msra.mxu0 0.0
      %332 = vmatpush.msra.mxu0 0.0
      %333 = vmatpush.msra.mxu0 0.0
      %334 = vmatpush.msra.mxu0 0.0
      %335 = vmatpush.msra.mxu0 0.0
      %336 = vmatpush.msra.mxu0 0.0
      %337 = vmatpush.msra.mxu0 0.0
      %338 = vmatpush.msra.mxu0 0.0
      %339 = vmatpush.msra.mxu0 %v302
      %340 = vmatmul.f32.gmra.mxu0 %v298
      %v341 = vpop.f32.mrf.mxu0
      %v342 = vadd.f32 0.0, %v341
      %343 = vdwg.mxu0
      %v344 = vadd.f32 %v262, %v322
      %v345 = vadd.f32 %v282, %v342
      %v346 = vld [vmem:[%s165] sm:$0xff]
      %s347 = scalar_lea.vmem %s1, 12
      %v348 = vld [vmem:[%s347] sm:$0xf]
      %350 = vst [vmem:[#allocation1] ss:$2 sm:$0xff] %v346
      %v351 = vld.sshfl [vmem:[#allocation1] sm:$0xff pattern:$0x75316420]
      %v352 = vld.sshfl [vmem:[#allocation1 + $0x8] sm:$0xff pattern:$0x75316420]
      %353 = vrot.lane.b32.xlu0 %v351, 112
      %v354 = vpop.permute.xlu0 %353
      %355 = vrot.lane.b32.xlu0 %v352, 112
      %v356 = vpop.permute.xlu0 %355
      %vm357 = vcmask 916480
      %v358 = vsel %vm357, %v354, %v356
      %v360 = vsel %vm185, %v348, 0
      %v362 = vsel %vm189, %v358, 0
      %v364 = vsel %vm189, %v356, 0
      %366 = vmatpush.msra.mxu0 0.0
      %367 = vmatpush.msra.mxu0 0.0
      %368 = vmatpush.msra.mxu0 0.0
      %369 = vmatpush.msra.mxu0 0.0
      %370 = vmatpush.msra.mxu0 0.0
      %371 = vmatpush.msra.mxu0 0.0
      %372 = vmatpush.msra.mxu0 0.0
      %373 = vmatpush.msra.mxu0 0.0
      %374 = vmatpush.msra.mxu0 0.0
      %375 = vmatpush.msra.mxu0 0.0
      %376 = vmatpush.msra.mxu0 0.0
      %377 = vmatpush.msra.mxu0 0.0
      %378 = vmatpush.msra.mxu0 0.0
      %379 = vmatpush.msra.mxu0 0.0
      %380 = vmatpush.msra.mxu0 0.0
      %381 = vmatpush.msra.mxu0 %v362
      %382 = vmatmul.f32.gmra.mxu0 %v360
      %v383 = vpop.f32.mrf.mxu0
      %v384 = vadd.f32 0.0, %v383
      %385 = vdwg.mxu0
      %386 = vmatpush.msra.mxu0 0.0
      %387 = vmatpush.msra.mxu0 0.0
      %388 = vmatpush.msra.mxu0 0.0
      %389 = vmatpush.msra.mxu0 0.0
      %390 = vmatpush.msra.mxu0 0.0
      %391 = vmatpush.msra.mxu0 0.0
      %392 = vmatpush.msra.mxu0 0.0
      %393 = vmatpush.msra.mxu0 0.0
      %394 = vmatpush.msra.mxu0 0.0
      %395 = vmatpush.msra.mxu0 0.0
      %396 = vmatpush.msra.mxu0 0.0
      %397 = vmatpush.msra.mxu0 0.0
      %398 = vmatpush.msra.mxu0 0.0
      %399 = vmatpush.msra.mxu0 0.0
      %400 = vmatpush.msra.mxu0 0.0
      %401 = vmatpush.msra.mxu0 %v364
      %402 = vmatmul.f32.gmra.mxu0 %v360
      %v403 = vpop.f32.mrf.mxu0
      %v404 = vadd.f32 0.0, %v403
      %405 = vdwg.mxu0
      %v406 = vadd.f32 %v344, %v384
      %v407 = vadd.f32 %v345, %v404
      %v408 = vld [vmem:[%s165] sm:$0xff]
      %s409 = scalar_lea.vmem %s1, 16
      %v410 = vld [vmem:[%s409] sm:$0xf]
      %412 = vst [vmem:[#allocation1] ss:$2 sm:$0xff] %v408
      %v413 = vld.sshfl [vmem:[#allocation1] sm:$0xff pattern:$0x75316420]
      %v414 = vld.sshfl [vmem:[#allocation1 + $0x8] sm:$0xff pattern:$0x75316420]
      %415 = vrot.lane.b32.xlu0 %v413, 111
      %v416 = vpop.permute.xlu0 %415
      %417 = vrot.lane.b32.xlu0 %v414, 111
      %v418 = vpop.permute.xlu0 %417
      %vm419 = vcmask 908288
      %v420 = vsel %vm419, %v416, %v418
      %v422 = vsel %vm185, %v410, 0
      %v424 = vsel %vm189, %v420, 0
      %v426 = vsel %vm189, %v418, 0
      %428 = vmatpush.msra.mxu0 0.0
      %429 = vmatpush.msra.mxu0 0.0
      %430 = vmatpush.msra.mxu0 0.0
      %431 = vmatpush.msra.mxu0 0.0
      %432 = vmatpush.msra.mxu0 0.0
      %433 = vmatpush.msra.mxu0 0.0
      %434 = vmatpush.msra.mxu0 0.0
      %435 = vmatpush.msra.mxu0 0.0
      %436 = vmatpush.msra.mxu0 0.0
      %437 = vmatpush.msra.mxu0 0.0
      %438 = vmatpush.msra.mxu0 0.0
      %439 = vmatpush.msra.mxu0 0.0
      %440 = vmatpush.msra.mxu0 0.0
      %441 = vmatpush.msra.mxu0 0.0
      %442 = vmatpush.msra.mxu0 0.0
      %443 = vmatpush.msra.mxu0 %v424
      %444 = vmatmul.f32.gmra.mxu0 %v422
      %v445 = vpop.f32.mrf.mxu0
      %v446 = vadd.f32 0.0, %v445
      %447 = vdwg.mxu0
      %448 = vmatpush.msra.mxu0 0.0
      %449 = vmatpush.msra.mxu0 0.0
      %450 = vmatpush.msra.mxu0 0.0
      %451 = vmatpush.msra.mxu0 0.0
      %452 = vmatpush.msra.mxu0 0.0
      %453 = vmatpush.msra.mxu0 0.0
      %454 = vmatpush.msra.mxu0 0.0
      %455 = vmatpush.msra.mxu0 0.0
      %456 = vmatpush.msra.mxu0 0.0
      %457 = vmatpush.msra.mxu0 0.0
      %458 = vmatpush.msra.mxu0 0.0
      %459 = vmatpush.msra.mxu0 0.0
      %460 = vmatpush.msra.mxu0 0.0
      %461 = vmatpush.msra.mxu0 0.0
      %462 = vmatpush.msra.mxu0 0.0
      %463 = vmatpush.msra.mxu0 %v426
      %464 = vmatmul.f32.gmra.mxu0 %v422
      %v465 = vpop.f32.mrf.mxu0
      %v466 = vadd.f32 0.0, %v465
      %467 = vdwg.mxu0
      %v468 = vadd.f32 %v406, %v446
      %v469 = vadd.f32 %v407, %v466
      %v470 = vld [vmem:[%s165] sm:$0xff]
      %s471 = scalar_lea.vmem %s1, 20
      %v472 = vld [vmem:[%s471] sm:$0xf]
      %474 = vst [vmem:[#allocation1] ss:$2 sm:$0xff] %v470
      %v475 = vld.sshfl [vmem:[#allocation1] sm:$0xff pattern:$0x75316420]
      %v476 = vld.sshfl [vmem:[#allocation1 + $0x8] sm:$0xff pattern:$0x75316420]
      %477 = vrot.lane.b32.xlu0 %v475, 110
      %v478 = vpop.permute.xlu0 %477
      %479 = vrot.lane.b32.xlu0 %v476, 110
      %v480 = vpop.permute.xlu0 %479
      %vm481 = vcmask 900096
      %v482 = vsel %vm481, %v478, %v480
      %v484 = vsel %vm185, %v472, 0
      %v486 = vsel %vm189, %v482, 0
      %v488 = vsel %vm189, %v480, 0
      %490 = vmatpush.msra.mxu0 0.0
      %491 = vmatpush.msra.mxu0 0.0
      %492 = vmatpush.msra.mxu0 0.0
      %493 = vmatpush.msra.mxu0 0.0
      %494 = vmatpush.msra.mxu0 0.0
      %495 = vmatpush.msra.mxu0 0.0
      %496 = vmatpush.msra.mxu0 0.0
      %497 = vmatpush.msra.mxu0 0.0
      %498 = vmatpush.msra.mxu0 0.0
      %499 = vmatpush.msra.mxu0 0.0
      %500 = vmatpush.msra.mxu0 0.0
      %501 = vmatpush.msra.mxu0 0.0
      %502 = vmatpush.msra.mxu0 0.0
      %503 = vmatpush.msra.mxu0 0.0
      %504 = vmatpush.msra.mxu0 0.0
      %505 = vmatpush.msra.mxu0 %v486
      %506 = vmatmul.f32.gmra.mxu0 %v484
      %v507 = vpop.f32.mrf.mxu0
      %v508 = vadd.f32 0.0, %v507
      %509 = vdwg.mxu0
      %510 = vmatpush.msra.mxu0 0.0
      %511 = vmatpush.msra.mxu0 0.0
      %512 = vmatpush.msra.mxu0 0.0
      %513 = vmatpush.msra.mxu0 0.0
      %514 = vmatpush.msra.mxu0 0.0
      %515 = vmatpush.msra.mxu0 0.0
      %516 = vmatpush.msra.mxu0 0.0
      %517 = vmatpush.msra.mxu0 0.0
      %518 = vmatpush.msra.mxu0 0.0
      %519 = vmatpush.msra.mxu0 0.0
      %520 = vmatpush.msra.mxu0 0.0
      %521 = vmatpush.msra.mxu0 0.0
      %522 = vmatpush.msra.mxu0 0.0
      %523 = vmatpush.msra.mxu0 0.0
      %524 = vmatpush.msra.mxu0 0.0
      %525 = vmatpush.msra.mxu0 %v488
      %526 = vmatmul.f32.gmra.mxu0 %v484
      %v527 = vpop.f32.mrf.mxu0
      %v528 = vadd.f32 0.0, %v527
      %529 = vdwg.mxu0
      %v530 = vadd.f32 %v468, %v508
      %v531 = vadd.f32 %v469, %v528
      %v532 = vld [vmem:[%s165] sm:$0xff]
      %s533 = scalar_lea.vmem %s1, 24
      %v534 = vld [vmem:[%s533] sm:$0xf]
      %536 = vst [vmem:[#allocation1] ss:$2 sm:$0xff] %v532
      %v537 = vld.sshfl [vmem:[#allocation1] sm:$0xff pattern:$0x75316420]
      %v538 = vld.sshfl [vmem:[#allocation1 + $0x8] sm:$0xff pattern:$0x75316420]
      %539 = vrot.lane.b32.xlu0 %v537, 96
      %v540 = vpop.permute.xlu0 %539
      %541 = vrot.lane.b32.xlu0 %v538, 96
      %v542 = vpop.permute.xlu0 %541
      %vm543 = vcmask 785408
      %v544 = vsel %vm543, %v540, %v542
      %v546 = vsel %vm185, %v534, 0
      %v548 = vsel %vm189, %v544, 0
      %v550 = vsel %vm189, %v542, 0
      %552 = vmatpush.msra.mxu0 0.0
      %553 = vmatpush.msra.mxu0 0.0
      %554 = vmatpush.msra.mxu0 0.0
      %555 = vmatpush.msra.mxu0 0.0
      %556 = vmatpush.msra.mxu0 0.0
      %557 = vmatpush.msra.mxu0 0.0
      %558 = vmatpush.msra.mxu0 0.0
      %559 = vmatpush.msra.mxu0 0.0
      %560 = vmatpush.msra.mxu0 0.0
      %561 = vmatpush.msra.mxu0 0.0
      %562 = vmatpush.msra.mxu0 0.0
      %563 = vmatpush.msra.mxu0 0.0
      %564 = vmatpush.msra.mxu0 0.0
      %565 = vmatpush.msra.mxu0 0.0
      %566 = vmatpush.msra.mxu0 0.0
      %567 = vmatpush.msra.mxu0 %v548
      %568 = vmatmul.f32.gmra.mxu0 %v546
      %v569 = vpop.f32.mrf.mxu0
      %v570 = vadd.f32 0.0, %v569
      %571 = vdwg.mxu0
      %572 = vmatpush.msra.mxu0 0.0
      %573 = vmatpush.msra.mxu0 0.0
      %574 = vmatpush.msra.mxu0 0.0
      %575 = vmatpush.msra.mxu0 0.0
      %576 = vmatpush.msra.mxu0 0.0
      %577 = vmatpush.msra.mxu0 0.0
      %578 = vmatpush.msra.mxu0 0.0
      %579 = vmatpush.msra.mxu0 0.0
      %580 = vmatpush.msra.mxu0 0.0
      %581 = vmatpush.msra.mxu0 0.0
      %582 = vmatpush.msra.mxu0 0.0
      %583 = vmatpush.msra.mxu0 0.0
      %584 = vmatpush.msra.mxu0 0.0
      %585 = vmatpush.msra.mxu0 0.0
      %586 = vmatpush.msra.mxu0 0.0
      %587 = vmatpush.msra.mxu0 %v550
      %588 = vmatmul.f32.gmra.mxu0 %v546
      %v589 = vpop.f32.mrf.mxu0
      %v590 = vadd.f32 0.0, %v589
      %591 = vdwg.mxu0
      %v592 = vadd.f32 %v530, %v570
      %v593 = vadd.f32 %v531, %v590
      %v594 = vld [vmem:[%s165] sm:$0xff]
      %s595 = scalar_lea.vmem %s1, 28
      %v596 = vld [vmem:[%s595] sm:$0xf]
      %598 = vst [vmem:[#allocation1] ss:$2 sm:$0xff] %v594
      %v599 = vld.sshfl [vmem:[#allocation1] sm:$0xff pattern:$0x75316420]
      %v600 = vld.sshfl [vmem:[#allocation1 + $0x8] sm:$0xff pattern:$0x75316420]
      %601 = vrot.lane.b32.xlu0 %v599, 95
      %v602 = vpop.permute.xlu0 %601
      %603 = vrot.lane.b32.xlu0 %v600, 95
      %v604 = vpop.permute.xlu0 %603
      %vm605 = vcmask 777216
      %v606 = vsel %vm605, %v602, %v604
      %v608 = vsel %vm185, %v596, 0
      %v610 = vsel %vm189, %v606, 0
      %v612 = vsel %vm189, %v604, 0
      %614 = vmatpush.msra.mxu0 0.0
      %615 = vmatpush.msra.mxu0 0.0
      %616 = vmatpush.msra.mxu0 0.0
      %617 = vmatpush.msra.mxu0 0.0
      %618 = vmatpush.msra.mxu0 0.0
      %619 = vmatpush.msra.mxu0 0.0
      %620 = vmatpush.msra.mxu0 0.0
      %621 = vmatpush.msra.mxu0 0.0
      %622 = vmatpush.msra.mxu0 0.0
      %623 = vmatpush.msra.mxu0 0.0
      %624 = vmatpush.msra.mxu0 0.0
      %625 = vmatpush.msra.mxu0 0.0
      %626 = vmatpush.msra.mxu0 0.0
      %627 = vmatpush.msra.mxu0 0.0
      %628 = vmatpush.msra.mxu0 0.0
      %629 = vmatpush.msra.mxu0 %v610
      %630 = vmatmul.f32.gmra.mxu0 %v608
      %v631 = vpop.f32.mrf.mxu0
      %v632 = vadd.f32 0.0, %v631
      %633 = vdwg.mxu0
      %634 = vmatpush.msra.mxu0 0.0
      %635 = vmatpush.msra.mxu0 0.0
      %636 = vmatpush.msra.mxu0 0.0
      %637 = vmatpush.msra.mxu0 0.0
      %638 = vmatpush.msra.mxu0 0.0
      %639 = vmatpush.msra.mxu0 0.0
      %640 = vmatpush.msra.mxu0 0.0
      %641 = vmatpush.msra.mxu0 0.0
      %642 = vmatpush.msra.mxu0 0.0
      %643 = vmatpush.msra.mxu0 0.0
      %644 = vmatpush.msra.mxu0 0.0
      %645 = vmatpush.msra.mxu0 0.0
      %646 = vmatpush.msra.mxu0 0.0
      %647 = vmatpush.msra.mxu0 0.0
      %648 = vmatpush.msra.mxu0 0.0
      %649 = vmatpush.msra.mxu0 %v612
      %650 = vmatmul.f32.gmra.mxu0 %v608
      %v651 = vpop.f32.mrf.mxu0
      %v652 = vadd.f32 0.0, %v651
      %653 = vdwg.mxu0
      %v654 = vadd.f32 %v592, %v632
      %v655 = vadd.f32 %v593, %v652
      %v656 = vld [vmem:[%s165] sm:$0xff]
      %s657 = scalar_lea.vmem %s1, 32
      %v658 = vld [vmem:[%s657] sm:$0xf]
      %660 = vst [vmem:[#allocation1] ss:$2 sm:$0xff] %v656
      %v661 = vld.sshfl [vmem:[#allocation1] sm:$0xff pattern:$0x75316420]
      %v662 = vld.sshfl [vmem:[#allocation1 + $0x8] sm:$0xff pattern:$0x75316420]
      %663 = vrot.lane.b32.xlu0 %v661, 94
      %v664 = vpop.permute.xlu0 %663
      %665 = vrot.lane.b32.xlu0 %v662, 94
      %v666 = vpop.permute.xlu0 %665
      %vm667 = vcmask 769024
      %v668 = vsel %vm667, %v664, %v666
      %v670 = vsel %vm185, %v658, 0
      %v672 = vsel %vm189, %v668, 0
      %v674 = vsel %vm189, %v666, 0
      %676 = vmatpush.msra.mxu0 0.0
      %677 = vmatpush.msra.mxu0 0.0
      %678 = vmatpush.msra.mxu0 0.0
      %679 = vmatpush.msra.mxu0 0.0
      %680 = vmatpush.msra.mxu0 0.0
      %681 = vmatpush.msra.mxu0 0.0
      %682 = vmatpush.msra.mxu0 0.0
      %683 = vmatpush.msra.mxu0 0.0
      %684 = vmatpush.msra.mxu0 0.0
      %685 = vmatpush.msra.mxu0 0.0
      %686 = vmatpush.msra.mxu0 0.0
      %687 = vmatpush.msra.mxu0 0.0
      %688 = vmatpush.msra.mxu0 0.0
      %689 = vmatpush.msra.mxu0 0.0
      %690 = vmatpush.msra.mxu0 0.0
      %691 = vmatpush.msra.mxu0 %v672
      %692 = vmatmul.f32.gmra.mxu0 %v670
      %v693 = vpop.f32.mrf.mxu0
      %v694 = vadd.f32 0.0, %v693
      %695 = vdwg.mxu0
      %696 = vmatpush.msra.mxu0 0.0
      %697 = vmatpush.msra.mxu0 0.0
      %698 = vmatpush.msra.mxu0 0.0
      %699 = vmatpush.msra.mxu0 0.0
      %700 = vmatpush.msra.mxu0 0.0
      %701 = vmatpush.msra.mxu0 0.0
      %702 = vmatpush.msra.mxu0 0.0
      %703 = vmatpush.msra.mxu0 0.0
      %704 = vmatpush.msra.mxu0 0.0
      %705 = vmatpush.msra.mxu0 0.0
      %706 = vmatpush.msra.mxu0 0.0
      %707 = vmatpush.msra.mxu0 0.0
      %708 = vmatpush.msra.mxu0 0.0
      %709 = vmatpush.msra.mxu0 0.0
      %710 = vmatpush.msra.mxu0 0.0
      %711 = vmatpush.msra.mxu0 %v674
      %712 = vmatmul.f32.gmra.mxu0 %v670
      %v713 = vpop.f32.mrf.mxu0
      %v714 = vadd.f32 0.0, %v713
      %715 = vdwg.mxu0
      %v716 = vadd.f32 %v654, %v694
      %v717 = vadd.f32 %v655, %v714
      %v718 = vld [vmem:[%s2] sm:$0xf]
      %720 = vset.pattern.permute.xlu0 0
      %721 = vperm.xlu0 %720, %v718
      %v722 = vpop.permute.xlu0 %721
      %v724 = vadd.f32 %v716, %v722
      %v725 = vadd.f32 %v717, %v722
      %v726 = vmax.f32 %v724, 0.0
      %v727 = vmax.f32 %v725, 0.0
      %vm728 = vcmp.ne.f32.partialorder %v724, %v724
      %vm729 = vcmp.ne.f32.partialorder %v725, %v725
      %v730 = vadd.f32 %v724, 0.0
      %v731 = vadd.f32 %v725, 0.0
      %v732 = vand.u32 2147483647, %v724
      %v733 = vand.u32 2147483647, %v725
      %v734 = vsub.f32 0.0, %v732
      %v735 = vsub.f32 0.0, %v733
      %v736 = vmul.f32 %v734, 1.442695
      %v737 = vpow.pop %v736
      %v738 = vmul.f32 %v735, 1.442695
      %v739 = vpow.pop %v738
      %v740 = vadd.f32 %v737, 1.0
      %v741 = vlog2.pop %v740
      %v742 = vmul.f32 %v741, 0.6931472
      %v743 = vmul.f32 -0.5, %v737
      %v744 = vadd.f32 %v743, 1.0
      %v745 = vmul.f32 %v744, %v737
      %v746 = vand.u32 2147483647, %v737
      %vm747 = vcmp.lt.f32.partialorder %v746, 0.0004427343
      %v748 = vsel %vm747, %v745, %v742
      %v749 = vadd.f32 %v739, 1.0
      %v750 = vlog2.pop %v749
      %v751 = vmul.f32 %v750, 0.6931472
      %v752 = vmul.f32 -0.5, %v739
      %v753 = vadd.f32 %v752, 1.0
      %v754 = vmul.f32 %v753, %v739
      %v755 = vand.u32 2147483647, %v739
      %vm756 = vcmp.lt.f32.partialorder %v755, 0.0004427343
      %v757 = vsel %vm756, %v754, %v751
      %v758 = vadd.f32 %v726, %v748
      %v759 = vadd.f32 %v727, %v757
      %v760 = vsel %vm728, %v730, %v758
      %v761 = vsel %vm729, %v731, %v759
      %v762 = vadd.f32 %v760, 1e-06
      %v763 = vadd.f32 %v761, 1e-06
      %v764 = vlaneseq
      %v765 = vshrl.u32 %v764, 7
      %vm766 = vcmp.lt.s32.totalorder %v765, 2
      %v767 = vsel %vm766, %v724, %v762
      %v768 = vsel %vm766, %v725, %v763
      %v771 = vrot.slane %v768, 4
      %v772 = vsel %vm189, %v767, %v771
      %vm774 = vcmask 769028
      %vm775 = vmor %vm774, %vm189
      %776 = vst.msk [vmem:[%s170] sm:$0xff] %vm775, %v772
      %p777 = scmp.lt.s32.totalorder %s14, 1
      %s778 = scalar_select %p777, %s14, 1
      %s779 = smul.addr %s778, 2
      %s780 = smul.addr %s779, 4
      %s781 = scalar_lea.vmem %s3, %s780
      // Predicated region
      $region33: #{_conv2d_normal_forward_impl.1} parent=31 // pred_check
        %p782 = pneg %p100
      $region34: #{_conv2d_normal_forward_impl.1} parent=31 // pred_check_branch
        %784 = sbr.rel (%p782) target = $region36
      $region35: #{_conv2d_normal_forward_impl.1} parent=31 // pred_region
        _
      $region36: #{_conv2d_normal_forward_impl.1} parent=31 // pred_fallthru
        _
    $region32: #{_conv2d_normal_forward_impl.1} parent=5 // pred_fallthru
      _
    %p785 = scmp.le.s32.totalorder 2, %s9
    // Predicated region
    $region37: #{_conv2d_normal_forward_impl.1} parent=5 // pred_check
      %p786 = pneg %p785
    $region38: #{_conv2d_normal_forward_impl.1} parent=5 // pred_check_branch
      %788 = sbr.rel (%p786) target = $region40
    $region39: #{_conv2d_normal_forward_impl.1} parent=5 // pred_region
      %s789 = ssub.s32 %s9, 2
      // Predicated region
      $region41: #{_conv2d_normal_forward_impl.1} parent=39 // pred_check
        %p790 = pneg %p106
      $region42: #{_conv2d_normal_forward_impl.1} parent=39 // pred_check_branch
        %792 = sbr.rel (%p790) target = $region44
      $region43: #{_conv2d_normal_forward_impl.1} parent=39 // pred_region
        %p793 = scmp.lt.s32.totalorder %s15, 1
        %s794 = scalar_select %p793, %s15, 1
        %s795 = smul.addr %s794, 2
        %s796 = smul.addr %s795, 4
        %s797 = scalar_lea.vmem %s3, %s796
      $region44: #{_conv2d_normal_forward_impl.1} parent=39 // pred_fallthru
        _
    $region40: #{_conv2d_normal_forward_impl.1} parent=5 // pred_fallthru
      _
  $region6: #{_conv2d_normal_forward_impl.1} parent=0 // loop_footer
    %s13 = sadd.s32 1, %s9
  $region7: #{_conv2d_normal_forward_impl.1} parent=0 // loop_footer_branch
    %8 = sbr.rel target = $region3
  $region8: #{_conv2d_normal_forward_impl.1} parent=0 // loop_exit
    _

</llo_original>
